<compile_context>
chip_gen: v5e
topology: v5e:2x2
jax: 0.10.0
libtpu: 0.0.40
codegen_flags: <defaults>
</compile_context>

<pallas_src>
import jax
import jax.numpy as jnp
from jax.experimental import pallas as pl
from jax.experimental.pallas import tpu as pltpu


def actor_net_kernel(x_ref, w1_ref, b1_ref, wh_ref, bh_ref, out_ref):
    """x: (TB, S), w1: (S, H), b1: (1, H), wh: (H, 2A), bh: (1, 2A), out: (TB, 2A)."""
    x = x_ref[...]                                   # (TB, S) f32
    w1 = w1_ref[...]                                 # (S, H)
    S = x.shape[1]

    # fc1 on the VPU: K = S is tiny (3), so an MXU contraction would pad the
    # reduction dim massively.  Unrolled broadcast-FMAs are essentially free.
    acc = x[:, 0:1] * w1[0:1, :]                     # (TB, H)
    for s in range(1, S):                            # static unroll, S is tiny
        acc = acc + x[:, s:s + 1] * w1[s:s + 1, :]
    h = jnp.maximum(acc + b1_ref[...], 0.0)          # (TB, H) relu

    # Fused heads: one MXU dot producing a single (TB, 2A) block
    # (columns [0:A] -> mu head, [A:2A] -> sigma head).
    y = jnp.dot(h, wh_ref[...], preferred_element_type=jnp.float32) + bh_ref[...]

    A = out_ref.shape[-1] // 2
    col = jax.lax.broadcasted_iota(jnp.int32, y.shape, dimension=1)
    mu = 2.0 * jnp.tanh(y)
    # numerically stable softplus = max(y,0) + log1p(exp(-|y|))   (EUP ops)
    sigma = jnp.maximum(y, 0.0) + jnp.log1p(jnp.exp(-jnp.abs(y)))
    out_ref[...] = jnp.where(col < A, mu, sigma)     # single store


def prepare_params(params):
    """One-time layout conversion: PyTorch (out, in) weights -> kernel layout.

    Returns weights already transposed to (in, out), biases as (1, out), and
    the two heads concatenated into a single (H, 2A) weight / (1, 2A) bias.
    """
    H = params["w1"].shape[0]
    A = params["w_mu"].shape[0]
    return {
        "w1": jnp.asarray(params["w1"]).T,                              # (S, H)
        "b1": jnp.asarray(params["b1"]).reshape(1, H),                  # (1, H)
        "w_heads": jnp.concatenate(
            [jnp.asarray(params["w_mu"]).T, jnp.asarray(params["w_std"]).T],
            axis=1),                                                    # (H, 2A)
        "b_heads": jnp.concatenate(
            [jnp.asarray(params["b_mu"]), jnp.asarray(params["b_std"])]
        ).reshape(1, 2 * A),                                            # (1, 2A)
    }


def actor_net_forward(state, prep, *, max_tb=1024):
    """state: (B, state_dim) f32.  prep: output of prepare_params().

    Returns (mu, sigma), each (B, action_dim) f32.
    """
    B, S = state.shape
    w1, b1 = prep["w1"], prep["b1"]
    wh, bh = prep["w_heads"], prep["b_heads"]
    H = w1.shape[1]
    A2 = wh.shape[1]
    A = A2 // 2

    # Batch tile: full batch if small, else a sublane-aligned tile.  Even at
    # TB=1024 the (TB, H) f32 activations are far under the 32 MiB scoped
    # VMEM default on every generation (v7x physical VMEM is 64 MiB).
    TB = B if B <= max_tb else max_tb
    grid = (pl.cdiv(B, TB),)

    out = pl.pallas_call(
        actor_net_kernel,
        out_shape=jax.ShapeDtypeStruct((B, A2), jnp.float32),
        grid=grid,
        in_specs=[
            pl.BlockSpec((TB, S), lambda i: (i, 0)),   # state tile
            pl.BlockSpec((S, H), lambda i: (0, 0)),    # fc1 weight (resident)
            pl.BlockSpec((1, H), lambda i: (0, 0)),    # fc1 bias
            pl.BlockSpec((H, A2), lambda i: (0, 0)),   # fused head weight
            pl.BlockSpec((1, A2), lambda i: (0, 0)),   # fused head bias
        ],
        out_specs=pl.BlockSpec((TB, A2), lambda i: (i, 0)),
        compiler_params=pltpu.CompilerParams(
            dimension_semantics=("parallel",)),        # shard batch across TCs
    )(state, w1, b1, wh, bh)

    return out[:, :A], out[:, A:]


def init_params(key, state_dim, hidden_dim, action_dim):
    """Deterministic init, PyTorch nn.Linear weight shapes (out, in)."""
    k1, k2, k3, k4, k5, k6 = jax.random.split(key, 6)
    u = lambda k, shape, fan_in: jax.random.uniform(
        k, shape, jnp.float32, -1.0 / jnp.sqrt(fan_in), 1.0 / jnp.sqrt(fan_in))
    return {
        "w1":    u(k1, (hidden_dim, state_dim), state_dim),
        "b1":    u(k2, (hidden_dim,), state_dim),
        "w_mu":  u(k3, (action_dim, hidden_dim), hidden_dim),
        "b_mu":  u(k4, (action_dim,), hidden_dim),
        "w_std": u(k5, (action_dim, hidden_dim), hidden_dim),
        "b_std": u(k6, (action_dim,), hidden_dim),
    }


def actor_net_ref(state, params):
    """Pure-JAX reference matching the PyTorch module."""
    h = jax.nn.relu(state @ params["w1"].T + params["b1"])
    mu = 2.0 * jnp.tanh(h @ params["w_mu"].T + params["b_mu"])
    sigma = jax.nn.softplus(h @ params["w_std"].T + params["b_std"])
    return mu, sigma


if __name__ == "__main__":
    # Pendulum-v1: state_dim=3, action_dim=1; small hidden for the demo.
    batch, state_dim, hidden_dim, action_dim = 8, 3, 32, 1

    key = jax.random.PRNGKey(0)
    kp, kx = jax.random.split(key)
    params = init_params(kp, state_dim, hidden_dim, action_dim)
    state = jax.random.normal(kx, (batch, state_dim), jnp.float32)

    prep = prepare_params(params)                 # one-time layout conversion
    mu, sigma = actor_net_forward(state, prep)
    jax.block_until_ready((mu, sigma))

    mu_ref, sigma_ref = actor_net_ref(state, params)
    assert mu.shape == (batch, action_dim) and sigma.shape == (batch, action_dim)
    assert jnp.allclose(mu, mu_ref, atol=1e-5), "mu mismatch"
    assert jnp.allclose(sigma, sigma_ref, atol=1e-5), "sigma mismatch"

    print("KERNEL_OK")
</pallas_src>

<mosaic_0001>
module attributes {stable_mosaic.version = 11 : i64} {
  func.func @actor_net_kernel(%arg0: i32, %arg1: memref<8x3xf32, #tpu.memory_space<vmem>>, %arg2: memref<3x32xf32, #tpu.memory_space<vmem>>, %arg3: memref<1x32xf32, #tpu.memory_space<vmem>>, %arg4: memref<32x2xf32, #tpu.memory_space<vmem>>, %arg5: memref<1x2xf32, #tpu.memory_space<vmem>>, %arg6: memref<8x2xf32, #tpu.memory_space<vmem>>) attributes {dimension_semantics = [#tpu.dimension_semantics<parallel>], iteration_bounds = array<i64: 1>, scalar_prefetch = 0 : i64, scratch_operands = 0 : i64, tpu.core_type = #tpu.core_type<tc>, window_params = [{transform_indices = @transform_0, window_bounds = array<i64: 8, 3>}, {pipeline_mode = #tpu.pipeline_mode<synchronous>, transform_indices = @transform_1, window_bounds = array<i64: 3, 32>}, {pipeline_mode = #tpu.pipeline_mode<synchronous>, transform_indices = @transform_2, window_bounds = array<i64: 1, 32>}, {pipeline_mode = #tpu.pipeline_mode<synchronous>, transform_indices = @transform_3, window_bounds = array<i64: 32, 2>}, {pipeline_mode = #tpu.pipeline_mode<synchronous>, transform_indices = @transform_4, window_bounds = array<i64: 1, 2>}, {transform_indices = @transform_5, window_bounds = array<i64: 8, 2>}]} {
    %c0 = arith.constant 0 : index
    %c0_0 = arith.constant 0 : index
    %0 = vector.load %arg1[%c0, %c0_0] : memref<8x3xf32, #tpu.memory_space<vmem>>, vector<8x3xf32>
    %c0_1 = arith.constant 0 : index
    %c0_2 = arith.constant 0 : index
    %1 = vector.load %arg2[%c0_1, %c0_2] : memref<3x32xf32, #tpu.memory_space<vmem>>, vector<3x32xf32>
    %2 = vector.extract_strided_slice %0 {offsets = [0, 0], sizes = [8, 1], strides = [1, 1]} : vector<8x3xf32> to vector<8x1xf32>
    %3 = vector.extract_strided_slice %1 {offsets = [0, 0], sizes = [1, 32], strides = [1, 1]} : vector<3x32xf32> to vector<1x32xf32>
    %4 = vector.broadcast %2 : vector<8x1xf32> to vector<8x32xf32>
    %5 = vector.broadcast %3 : vector<1x32xf32> to vector<8x32xf32>
    %6 = arith.mulf %4, %5 : vector<8x32xf32>
    %7 = vector.extract_strided_slice %0 {offsets = [0, 1], sizes = [8, 1], strides = [1, 1]} : vector<8x3xf32> to vector<8x1xf32>
    %8 = vector.extract_strided_slice %1 {offsets = [1, 0], sizes = [1, 32], strides = [1, 1]} : vector<3x32xf32> to vector<1x32xf32>
    %9 = vector.broadcast %7 : vector<8x1xf32> to vector<8x32xf32>
    %10 = vector.broadcast %8 : vector<1x32xf32> to vector<8x32xf32>
    %11 = arith.mulf %9, %10 : vector<8x32xf32>
    %12 = arith.addf %6, %11 : vector<8x32xf32>
    %13 = vector.extract_strided_slice %0 {offsets = [0, 2], sizes = [8, 1], strides = [1, 1]} : vector<8x3xf32> to vector<8x1xf32>
    %14 = vector.extract_strided_slice %1 {offsets = [2, 0], sizes = [1, 32], strides = [1, 1]} : vector<3x32xf32> to vector<1x32xf32>
    %15 = vector.broadcast %13 : vector<8x1xf32> to vector<8x32xf32>
    %16 = vector.broadcast %14 : vector<1x32xf32> to vector<8x32xf32>
    %17 = arith.mulf %15, %16 : vector<8x32xf32>
    %18 = arith.addf %12, %17 : vector<8x32xf32>
    %c0_3 = arith.constant 0 : index
    %c0_4 = arith.constant 0 : index
    %19 = vector.load %arg3[%c0_3, %c0_4] : memref<1x32xf32, #tpu.memory_space<vmem>>, vector<1x32xf32>
    %20 = vector.broadcast %19 : vector<1x32xf32> to vector<8x32xf32>
    %21 = arith.addf %18, %20 : vector<8x32xf32>
    %cst = arith.constant 0.000000e+00 : f32
    %22 = vector.broadcast %cst : f32 to vector<8x32xf32>
    %23 = arith.maximumf %21, %22 : vector<8x32xf32>
    %c0_5 = arith.constant 0 : index
    %c0_6 = arith.constant 0 : index
    %24 = vector.load %arg4[%c0_5, %c0_6] : memref<32x2xf32, #tpu.memory_space<vmem>>, vector<32x2xf32>
    %cst_7 = arith.constant dense<0.000000e+00> : vector<8x2xf32>
    %25 = tpu.matmul %23, %24, %cst_7 {dimension_numbers = #tpu.dot_dimension_numbers<[1], [0], [0], [1], [0, 0, 1, 1], [], []>} : vector<8x32xf32>, vector<32x2xf32>, vector<8x2xf32> -> vector<8x2xf32>
    %c0_8 = arith.constant 0 : index
    %c0_9 = arith.constant 0 : index
    %26 = vector.load %arg5[%c0_8, %c0_9] : memref<1x2xf32, #tpu.memory_space<vmem>>, vector<1x2xf32>
    %27 = vector.broadcast %26 : vector<1x2xf32> to vector<8x2xf32>
    %28 = arith.addf %25, %27 : vector<8x2xf32>
    %29 = tpu.iota {dimensions = array<i32: 1>} : vector<8x2xi32>
    %30 = math.tanh %28 : vector<8x2xf32>
    %cst_10 = arith.constant 2.000000e+00 : f32
    %31 = vector.broadcast %cst_10 : f32 to vector<8x2xf32>
    %32 = arith.mulf %31, %30 : vector<8x2xf32>
    %cst_11 = arith.constant 0.000000e+00 : f32
    %33 = vector.broadcast %cst_11 : f32 to vector<8x2xf32>
    %34 = arith.maximumf %28, %33 : vector<8x2xf32>
    %35 = math.absf %28 : vector<8x2xf32>
    %cst_12 = arith.constant 0.000000e+00 : f32
    %36 = vector.broadcast %cst_12 : f32 to vector<8x2xf32>
    %37 = arith.subf %36, %35 : vector<8x2xf32>
    %38 = math.exp %37 : vector<8x2xf32>
    %39 = math.log1p %38 : vector<8x2xf32>
    %40 = arith.addf %34, %39 : vector<8x2xf32>
    %c1_i32 = arith.constant 1 : i32
    %41 = vector.broadcast %c1_i32 : i32 to vector<8x2xi32>
    %42 = arith.cmpi slt, %29, %41 : vector<8x2xi32>
    %43 = arith.select %42, %32, %40 : vector<8x2xi1>, vector<8x2xf32>
    %c0_13 = arith.constant 0 : index
    %c0_14 = arith.constant 0 : index
    %44 = vector.load %arg6[%c0_13, %c0_14] : memref<8x2xf32, #tpu.memory_space<vmem>>, vector<8x2xf32>
    tpu.vector_store %arg6[%c0_13, %c0_14], %43 {strides = array<i32>} : memref<8x2xf32, #tpu.memory_space<vmem>>, vector<8x2xf32>,
    return
  }
  func.func @transform_0(%arg0: i32) -> (i32, i32) {
    %c0_i32 = arith.constant 0 : i32
    %c0_i32_0 = arith.constant 0 : i32
    return %arg0, %c0_i32 : i32, i32
  }
  func.func @transform_1(%arg0: i32) -> (i32, i32) {
    %c0_i32 = arith.constant 0 : i32
    %c0_i32_0 = arith.constant 0 : i32
    %c0_i32_1 = arith.constant 0 : i32
    return %c0_i32, %c0_i32_0 : i32, i32
  }
  func.func @transform_2(%arg0: i32) -> (i32, i32) {
    %c0_i32 = arith.constant 0 : i32
    %c0_i32_0 = arith.constant 0 : i32
    %c0_i32_1 = arith.constant 0 : i32
    return %c0_i32, %c0_i32_0 : i32, i32
  }
  func.func @transform_3(%arg0: i32) -> (i32, i32) {
    %c0_i32 = arith.constant 0 : i32
    %c0_i32_0 = arith.constant 0 : i32
    %c0_i32_1 = arith.constant 0 : i32
    return %c0_i32, %c0_i32_0 : i32, i32
  }
  func.func @transform_4(%arg0: i32) -> (i32, i32) {
    %c0_i32 = arith.constant 0 : i32
    %c0_i32_0 = arith.constant 0 : i32
    %c0_i32_1 = arith.constant 0 : i32
    return %c0_i32, %c0_i32_0 : i32, i32
  }
  func.func @transform_5(%arg0: i32) -> (i32, i32) {
    %c0_i32 = arith.constant 0 : i32
    %c0_i32_0 = arith.constant 0 : i32
    return %arg0, %c0_i32 : i32, i32
  }
}

</mosaic_0001>

<llo_original>
// kernel: tpu_custom_call.1
$region0: #{tpu_custom_call.1}
  #allocation0 [shape = 'u32[]', space=smem, size = 0x4, offset = 0x4, fixed_abs, tag = 'smem constant byte address 0x4 - core index']
  #allocation1 [shape = 'u32[72,128]{1,0:T(1,128)}', space=vmem, size = 0x9000, scoped, tag = 'internal scratch']
  %s0 = inlined_call_operand.vmem [shape: f32[8,3], index: 0, kind: input, shape index: {}]
  %s1 = inlined_call_operand.vmem [shape: f32[3,32], index: 1, kind: input, shape index: {}]
  %s2 = inlined_call_operand.vmem [shape: f32[1,32], index: 2, kind: input, shape index: {}]
  %s3 = inlined_call_operand.vmem [shape: f32[32,2], index: 3, kind: input, shape index: {}]
  %s4 = inlined_call_operand.vmem [shape: f32[1,2], index: 4, kind: input, shape index: {}]
  %s5 = inlined_call_operand.vmem [shape: f32[8,2], index: 5, kind: output, shape index: {}]
  %s6 = sld [smem:[#allocation0]]
  $region30: #{tpu_custom_call.1} parent=0
    _
  %s8 = ssub.s32 1, %s6
  %s9 = scalar_select 0, %s8, %s6
  // Predicated region
  $region2: #{tpu_custom_call.1} parent=0 // pred_check
    _
  $region3: #{tpu_custom_call.1} parent=0 // pred_check_branch
    %11 = sbr.rel (0) target = $region5
  $region4: #{tpu_custom_call.1} parent=0 // pred_region
    _
  $region5: #{tpu_custom_call.1} parent=0 // pred_fallthru
    _
  // Predicated region
  $region6: #{tpu_custom_call.1} parent=0 // pred_check
    _
  $region7: #{tpu_custom_call.1} parent=0 // pred_check_branch
    %13 = sbr.rel (0) target = $region9
  $region8: #{tpu_custom_call.1} parent=0 // pred_region
    _
  $region9: #{tpu_custom_call.1} parent=0 // pred_fallthru
    _
  // Predicated region
  $region10: #{tpu_custom_call.1} parent=0 // pred_check
    _
  $region11: #{tpu_custom_call.1} parent=0 // pred_check_branch
    %15 = sbr.rel (0) target = $region13
  $region12: #{tpu_custom_call.1} parent=0 // pred_region
    _
  $region13: #{tpu_custom_call.1} parent=0 // pred_fallthru
    _
  // Predicated region
  $region14: #{tpu_custom_call.1} parent=0 // pred_check
    _
  $region15: #{tpu_custom_call.1} parent=0 // pred_check_branch
    %17 = sbr.rel (0) target = $region17
  $region16: #{tpu_custom_call.1} parent=0 // pred_region
    _
  $region17: #{tpu_custom_call.1} parent=0 // pred_fallthru
    _
  // Predicated region
  $region18: #{tpu_custom_call.1} parent=0 // pred_check
    _
  $region19: #{tpu_custom_call.1} parent=0 // pred_check_branch
    %19 = sbr.rel (0) target = $region21
  $region20: #{tpu_custom_call.1} parent=0 // pred_region
    _
  $region21: #{tpu_custom_call.1} parent=0 // pred_fallthru
    _
  %v20 = vld [vmem:[%s0] sm:$0xff]
  %v21 = vld [vmem:[%s1] sm:$0x7]
  %23 = vset.pattern.permute.xlu0 0
  %24 = vperm.xlu0 %23, %v20
  %v25 = vpop.permute.xlu0 %24
  %v27 = vperm.slane %v21, 0
  %v28 = vmul.f32 %v25, %v27
  %29 = vset.pattern.permute.xlu0 1
  %30 = vperm.xlu0 %29, %v20
  %v31 = vpop.permute.xlu0 %30
  %v33 = vperm.slane %v21, 1
  %v34 = vmul.f32 %v31, %v33
  %v35 = vadd.f32 %v28, %v34
  %36 = vset.pattern.permute.xlu0 2
  %37 = vperm.xlu0 %36, %v20
  %v38 = vpop.permute.xlu0 %37
  %v40 = vperm.slane %v21, 2
  %v41 = vmul.f32 %v38, %v40
  %v42 = vadd.f32 %v35, %v41
  %v43 = vld [vmem:[%s2] sm:$0x1]
  %v45 = vperm.slane %v43, 0
  %v47 = vadd.f32 %v42, %v45
  %v48 = vmax.f32 %v47, 0.0
  %v49 = vld [vmem:[%s3] sm:$0xff]
  %v50 = vld [vmem:[%s3 + $0x8] sm:$0xff]
  %v51 = vld [vmem:[%s3 + $0x10] sm:$0xff]
  %v52 = vld [vmem:[%s3 + $0x18] sm:$0xff]
  %v53 = vld [vmem:[%s4] sm:$0x1]
  %v55 = vperm.slane %v53, 0
  %vm57 = vcmask 261120
  %v59 = vsel %vm57, %v48, 0
  %61 = vmatpush.msra.mxu0 0.0
  %62 = vmatpush.msra.mxu0 0.0
  %63 = vmatpush.msra.mxu0 0.0
  %64 = vmatpush.msra.mxu0 0.0
  %65 = vmatpush.msra.mxu0 0.0
  %66 = vmatpush.msra.mxu0 0.0
  %67 = vmatpush.msra.mxu0 0.0
  %68 = vmatpush.msra.mxu0 0.0
  %69 = vmatpush.msra.mxu0 0.0
  %70 = vmatpush.msra.mxu0 0.0
  %71 = vmatpush.msra.mxu0 0.0
  %72 = vmatpush.msra.mxu0 0.0
  %73 = vmatpush.msra.mxu0 %v52
  %74 = vmatpush.msra.mxu0 %v51
  %75 = vmatpush.msra.mxu0 %v50
  %76 = vmatpush.msra.mxu0 %v49
  %77 = vmatmul.f32.gmra.mxu0 %v59
  %v78 = vpop.f32.mrf.mxu0
  %v79 = vadd.f32 %v55, %v78
  %80 = vdwg.mxu0
  %v81 = vlaneseq
  %v82 = vand.u32 %v81, 127
  %v83 = vtanh.pop %v79
  %v84 = vmul.f32 %v83, 2.0
  %v85 = vmax.f32 %v79, 0.0
  %v86 = vand.u32 2147483647, %v79
  %v87 = vsub.f32 0.0, %v86
  %v88 = vmul.f32 %v87, 1.442695
  %v89 = vpow.pop %v88
  %v90 = vadd.f32 %v89, 1.0
  %v91 = vlog2.pop %v90
  %v92 = vmul.f32 %v91, 0.6931472
  %v93 = vmul.f32 -0.5, %v89
  %v94 = vadd.f32 %v93, 1.0
  %v95 = vmul.f32 %v94, %v89
  %v96 = vand.u32 2147483647, %v89
  %vm97 = vcmp.lt.f32.partialorder %v96, 0.0004427343
  %v98 = vsel %vm97, %v95, %v92
  %v99 = vadd.f32 %v85, %v98
  %vm100 = vcmp.lt.s32.totalorder %v82, 1
  %v101 = vsel %vm100, %v84, %v99
  %vm102 = vcmask 15360
  %103 = vst.msk [vmem:[%s5] sm:$0xff] %vm102, %v101
  // Predicated region
  $region22: #{tpu_custom_call.1} parent=0 // pred_check
    _
  $region23: #{tpu_custom_call.1} parent=0 // pred_check_branch
    %105 = sbr.rel (0) target = $region25
  $region24: #{tpu_custom_call.1} parent=0 // pred_region
    _
  $region25: #{tpu_custom_call.1} parent=0 // pred_fallthru
    _
  // Predicated region
  $region26: #{tpu_custom_call.1} parent=0 // pred_check
    _
  $region27: #{tpu_custom_call.1} parent=0 // pred_check_branch
    %107 = sbr.rel (0) target = $region29
  $region28: #{tpu_custom_call.1} parent=0 // pred_region
    _
  $region29: #{tpu_custom_call.1} parent=0 // pred_fallthru
    _

</llo_original>
